<compile_context>
chip_gen: v7x
topology: tpu7x:2x2x1
jax: 0.10.0
libtpu: 0.0.40
codegen_flags: <defaults>
</compile_context>

<pallas_src>
import functools

import jax
import jax.numpy as jnp
from jax import lax
from jax.experimental import pallas as pl
from jax.experimental.pallas import tpu as pltpu


# ----------------------------- Pallas kernel ------------------------------ #
def _fused_conv3x3_relu_kernel(x_ref, w_ref, b_ref, o_ref, *, H, Wp):
    """Fused 3x3 SAME conv + bias + ReLU, flattened-spatial (lane-dense) layout.

    x_ref: [B, C, (H+2)*Wp + 2]  zero-padded, spatially flattened images (bf16)
    w_ref: [Cout, 9*C]           taps, laid out [co, (dh*3+dw)*C + ci]  (bf16)
    b_ref: [Cout, 1]             bias column                            (f32)
    o_ref: [B, Cout, H*Wp]       output incl. 2 halo columns per row    (f32)
    """
    B = x_ref.shape[0]
    L = H * Wp                                   # output lanes per image (incl. halo)

    w = w_ref[...]                               # [Cout, 9*C] bf16 (hoisted)
    bias = b_ref[...]                            # [Cout, 1]  f32  (hoisted)

    for b in range(B):                           # static unroll over images this step
        x = x_ref[b]                             # [C, Lin] bf16
        # Fused im2col: 9 contiguous lane slices stacked along the sublane axis.
        patch = jnp.concatenate(
            [x[:, dh * Wp + dw: dh * Wp + dw + L]
             for dh in range(3) for dw in range(3)],
            axis=0)                              # [9*C, L] bf16
        # Single K=36 contraction, bf16 x bf16 inputs, f32 accumulate.
        acc = lax.dot_general(
            w, patch,
            dimension_numbers=(((1,), (0,)), ((), ())),
            preferred_element_type=jnp.float32)  # [Cout, L]
        o_ref[b] = jnp.maximum(acc + bias, 0.0).astype(o_ref.dtype)


def _pick_batch_per_step(n, per_image_bytes, max_step_bytes=1 << 20):
    """Largest divisor of n keeping per-step traffic <= ~1 MB while leaving
    >= min(n, 4) grid steps (so v7x's 2 TCs each still pipeline >= 2 steps)."""
    best = 1
    for b in range(1, n + 1):
        if n % b:
            continue
        if b * per_image_bytes > max_step_bytes:
            break
        if n // b >= min(n, 4):
            best = b
    return best


def fused_conv3x3_relu(x_flat, w_flat, bias_col, h, w, c_out):
    """x_flat: [N, C, (H+2)*(W+2)+2] bf16; w_flat: [Cout, 9*C] bf16;
    bias_col: [Cout, 1] f32  ->  [N, Cout, H*(W+2)] f32 (NCHW order, + halo cols)."""
    n, c, lin = x_flat.shape
    wp = w + 2
    l_out = h * wp
    per_image_bytes = c_out * l_out * 4 + c * lin * 2
    bps = _pick_batch_per_step(n, per_image_bytes)
    kernel = functools.partial(_fused_conv3x3_relu_kernel, H=h, Wp=wp)
    return pl.pallas_call(
        kernel,
        out_shape=jax.ShapeDtypeStruct((n, c_out, l_out), jnp.float32),
        grid=(n // bps,),
        in_specs=[
            pl.BlockSpec((bps, c, lin), lambda i: (i, 0, 0)),
            pl.BlockSpec((c_out, 9 * c), lambda i: (0, 0)),
            pl.BlockSpec((c_out, 1), lambda i: (0, 0)),
        ],
        out_specs=pl.BlockSpec((bps, c_out, l_out), lambda i: (i, 0, 0)),
        compiler_params=pltpu.CompilerParams(
            dimension_semantics=("parallel",)),   # batch steps shard across TCs (v7x)
    )(x_flat, w_flat, bias_col)


# ------------------------------- Wrapper ----------------------------------- #
class WrappedModelPallas:
    """Mirrors PyTorch WrappedModel: forward(x) = self.module(x)."""

    def __init__(self, module):
        self.module = module

    def forward(self, x):
        return self.module(x)


def make_inner_module(key, c_in=4, c_out=16):
    """Synthetic wrapped module: Conv2d(c_in, c_out, 3, padding=1) + ReLU (NCHW)."""
    kw, kb = jax.random.split(key)
    w = jax.random.normal(kw, (c_out, c_in, 3, 3), jnp.float32) * 0.1   # OIHW
    b = jax.random.normal(kb, (c_out,), jnp.float32) * 0.1

    # Weight layout matching the kernel's patch order: [co, (dh*3+dw)*C + ci],
    # bf16 so the MXU runs its native bf16 x bf16 -> f32 path.
    w_flat = jnp.transpose(w, (0, 2, 3, 1)).reshape(c_out, 9 * c_in).astype(jnp.bfloat16)
    b_col = b.reshape(c_out, 1)                                          # f32 epilogue

    def module_fn(x_nchw):
        n, c, h, wd = x_nchw.shape
        wp = wd + 2
        # Lane-dense prep (no NHWC transpose): pad spatially in NCHW, flatten
        # H,W onto lanes, add 2 trailing zeros so the last tap slice stays
        # in-bounds, and ship bf16 (f32 accumulation happens in-kernel).
        x_pad = jnp.pad(x_nchw, ((0, 0), (0, 0), (1, 1), (1, 1)))
        x_flat = x_pad.reshape(n, c, (h + 2) * wp)
        x_flat = jnp.pad(x_flat, ((0, 0), (0, 0), (0, 2))).astype(jnp.bfloat16)
        out = fused_conv3x3_relu(x_flat, w_flat, b_col, h, wd, c_out)   # [N,Cout,H*Wp]
        # Kernel output is already in NCHW element order; drop the 2 halo
        # columns per row (free reshape + cheap slice).
        return out.reshape(n, c_out, h, wp)[:, :, :, :wd]

    return module_fn, (w, b)


if __name__ == "__main__":
    key = jax.random.PRNGKey(0)
    k_x, k_p = jax.random.split(key)

    # Small shapes consistent with an NCHW conv feature extractor.
    x = jax.random.normal(k_x, (2, 4, 16, 16), jnp.float32)   # [N, C, H, W]

    module_fn, (w, b) = make_inner_module(k_p, c_in=4, c_out=16)
    model = WrappedModelPallas(jax.jit(module_fn))

    y = model.forward(x)
    jax.block_until_ready(y)
    assert y.shape == (2, 16, 16, 16), y.shape

    # Pure-JAX f32 reference (conv + bias + ReLU); tolerance covers the bf16
    # input/weight cast used to feed the MXU natively.
    y_ref = lax.conv_general_dilated(
        x, w, window_strides=(1, 1), padding=((1, 1), (1, 1)),
        dimension_numbers=("NCHW", "OIHW", "NCHW"))
    y_ref = jnp.maximum(y_ref + b[None, :, None, None], 0.0)
    max_err = float(jnp.max(jnp.abs(y - y_ref)))
    assert max_err < 5e-2, f"max abs err {max_err}"

    print("KERNEL_OK")
</pallas_src>

<mosaic_0001>
module attributes {stable_mosaic.version = 11 : i64} {
  func.func @_fused_conv3x3_relu_kernel(%arg0: i32, %arg1: memref<1x4x326xbf16, #tpu.memory_space<vmem>>, %arg2: memref<16x36xbf16, #tpu.memory_space<vmem>>, %arg3: memref<16x1xf32, #tpu.memory_space<vmem>>, %arg4: memref<1x16x288xf32, #tpu.memory_space<vmem>>) attributes {dimension_semantics = [#tpu.dimension_semantics<parallel>], iteration_bounds = array<i64: 2>, scalar_prefetch = 0 : i64, scratch_operands = 0 : i64, tpu.core_type = #tpu.core_type<tc>, window_params = [{transform_indices = @transform_0, window_bounds = array<i64: 1, 4, 326>}, {pipeline_mode = #tpu.pipeline_mode<synchronous>, transform_indices = @transform_1, window_bounds = array<i64: 16, 36>}, {pipeline_mode = #tpu.pipeline_mode<synchronous>, transform_indices = @transform_2, window_bounds = array<i64: 16, 1>}, {transform_indices = @transform_3, window_bounds = array<i64: 1, 16, 288>}]} {
    %c0 = arith.constant 0 : index
    %c0_0 = arith.constant 0 : index
    %0 = vector.load %arg2[%c0, %c0_0] : memref<16x36xbf16, #tpu.memory_space<vmem>>, vector<16x36xbf16>
    %c0_1 = arith.constant 0 : index
    %c0_2 = arith.constant 0 : index
    %1 = vector.load %arg3[%c0_1, %c0_2] : memref<16x1xf32, #tpu.memory_space<vmem>>, vector<16x1xf32>
    %c0_3 = arith.constant 0 : index
    %c0_4 = arith.constant 0 : index
    %c0_5 = arith.constant 0 : index
    %2 = vector.load %arg1[%c0_3, %c0_4, %c0_5] : memref<1x4x326xbf16, #tpu.memory_space<vmem>>, vector<1x4x326xbf16>
    %3 = vector.shape_cast %2 : vector<1x4x326xbf16> to vector<4x326xbf16>
    %4 = vector.extract_strided_slice %3 {offsets = [0, 0], sizes = [4, 288], strides = [1, 1]} : vector<4x326xbf16> to vector<4x288xbf16>
    %5 = vector.extract_strided_slice %3 {offsets = [0, 1], sizes = [4, 288], strides = [1, 1]} : vector<4x326xbf16> to vector<4x288xbf16>
    %6 = vector.extract_strided_slice %3 {offsets = [0, 2], sizes = [4, 288], strides = [1, 1]} : vector<4x326xbf16> to vector<4x288xbf16>
    %7 = vector.extract_strided_slice %3 {offsets = [0, 18], sizes = [4, 288], strides = [1, 1]} : vector<4x326xbf16> to vector<4x288xbf16>
    %8 = vector.extract_strided_slice %3 {offsets = [0, 19], sizes = [4, 288], strides = [1, 1]} : vector<4x326xbf16> to vector<4x288xbf16>
    %9 = vector.extract_strided_slice %3 {offsets = [0, 20], sizes = [4, 288], strides = [1, 1]} : vector<4x326xbf16> to vector<4x288xbf16>
    %10 = vector.extract_strided_slice %3 {offsets = [0, 36], sizes = [4, 288], strides = [1, 1]} : vector<4x326xbf16> to vector<4x288xbf16>
    %11 = vector.extract_strided_slice %3 {offsets = [0, 37], sizes = [4, 288], strides = [1, 1]} : vector<4x326xbf16> to vector<4x288xbf16>
    %12 = vector.extract_strided_slice %3 {offsets = [0, 38], sizes = [4, 288], strides = [1, 1]} : vector<4x326xbf16> to vector<4x288xbf16>
    %13 = tpu.concatenate %4, %5, %6, %7, %8, %9, %10, %11, %12 in 0 : vector<4x288xbf16>, vector<4x288xbf16>, vector<4x288xbf16>, vector<4x288xbf16>, vector<4x288xbf16>, vector<4x288xbf16>, vector<4x288xbf16>, vector<4x288xbf16>, vector<4x288xbf16> -> vector<36x288xbf16>
    %cst = arith.constant dense<0.000000e+00> : vector<16x288xf32>
    %14 = tpu.matmul %0, %13, %cst {dimension_numbers = #tpu.dot_dimension_numbers<[1], [0], [0], [1], [0, 0, 1, 1], [], []>} : vector<16x36xbf16>, vector<36x288xbf16>, vector<16x288xf32> -> vector<16x288xf32>
    %15 = vector.broadcast %1 : vector<16x1xf32> to vector<16x288xf32>
    %16 = arith.addf %14, %15 : vector<16x288xf32>
    %cst_6 = arith.constant 0.000000e+00 : f32
    %17 = vector.broadcast %cst_6 : f32 to vector<16x288xf32>
    %18 = arith.maximumf %16, %17 : vector<16x288xf32>
    %c0_7 = arith.constant 0 : index
    %c0_8 = arith.constant 0 : index
    %c0_9 = arith.constant 0 : index
    %19 = vector.load %arg4[%c0_7, %c0_8, %c0_9] : memref<1x16x288xf32, #tpu.memory_space<vmem>>, vector<1x16x288xf32>
    %20 = vector.shape_cast %19 : vector<1x16x288xf32> to vector<16x288xf32>
    %21 = vector.shape_cast %18 : vector<16x288xf32> to vector<1x16x288xf32>
    tpu.vector_store %arg4[%c0_7, %c0_8, %c0_9], %21 {strides = array<i32>} : memref<1x16x288xf32, #tpu.memory_space<vmem>>, vector<1x16x288xf32>,
    return
  }
  func.func @transform_0(%arg0: i32) -> (i32, i32, i32) {
    %c0_i32 = arith.constant 0 : i32
    %c0_i32_0 = arith.constant 0 : i32
    %c0_i32_1 = arith.constant 0 : i32
    return %arg0, %c0_i32, %c0_i32_0 : i32, i32, i32
  }
  func.func @transform_1(%arg0: i32) -> (i32, i32) {
    %c0_i32 = arith.constant 0 : i32
    %c0_i32_0 = arith.constant 0 : i32
    %c0_i32_1 = arith.constant 0 : i32
    return %c0_i32, %c0_i32_0 : i32, i32
  }
  func.func @transform_2(%arg0: i32) -> (i32, i32) {
    %c0_i32 = arith.constant 0 : i32
    %c0_i32_0 = arith.constant 0 : i32
    %c0_i32_1 = arith.constant 0 : i32
    return %c0_i32, %c0_i32_0 : i32, i32
  }
  func.func @transform_3(%arg0: i32) -> (i32, i32, i32) {
    %c0_i32 = arith.constant 0 : i32
    %c0_i32_0 = arith.constant 0 : i32
    %c0_i32_1 = arith.constant 0 : i32
    return %arg0, %c0_i32, %c0_i32_0 : i32, i32, i32
  }
}

</mosaic_0001>

<llo_original>
// kernel: module_fn.1
$region0: #{module_fn.1}
  #allocation0 [shape = 'u32[]', space=smem, size = 0x4, offset = 0x4, fixed_abs, tag = 'smem constant byte address 0x4 - core index']
  #allocation1 [shape = 'u32[144,128]{1,0:T(1,128)}', space=vmem, size = 0x12000, scoped, tag = 'internal scratch']
  %s0 = inlined_call_operand.vmem [shape: bf16[2,4,326], index: 0, kind: input, shape index: {}]
  %s1 = inlined_call_operand.vmem [shape: bf16[16,36], index: 1, kind: input, shape index: {}]
  %s2 = inlined_call_operand.vmem [shape: f32[16,1], index: 2, kind: input, shape index: {}]
  %s3 = inlined_call_operand.vmem [shape: f32[2,16,288], index: 3, kind: output, shape index: {}]
  %s4 = sld [smem:[#allocation0]]
  $region45: #{module_fn.1} parent=0
    _
  %s6 = ssub.s32 1, %s4
  %s7 = scalar_select 0, %s6, %s4
  loop: start=0, step=1, limit=4
  $region2: #{module_fn.1} parent=0 // loop_pre_header
    _
  $region3: #{module_fn.1} parent=0 // loop_header
    %s9 = sphi 0, %s13
    %p10 = scmp.ge.s32.totalorder %s9, 4
    %s19 = sphi 0, %s21
    %s22 = sphi 0, %s19
    %s23 = sphi 0, %s22
    %s39 = sphi 0, %s23
    %s43 = sphi 0, %s43
    %s45 = sphi 0, %s43
    %s46 = sphi 0, %s45
    %s60 = sphi 0, %s46
    %s64 = sphi 0, %s64
    %s66 = sphi 0, %s64
    %s67 = sphi 0, %s66
    %s81 = sphi 0, %s67
    %s87 = sphi 0, %s89
    %s90 = sphi 0, %s87
    %s91 = sphi 0, %s90
    %s107 = sphi 0, %s91
  $region4: #{module_fn.1} parent=0 // loop_header_branch
    %12 = sbr.rel (%p10) target = $region8
  $region5: #{module_fn.1} parent=0 // loop_body
    %s14 = ssub.s32 %s9, 1
    %s15 = ssub.s32 %s9, 2
    %s16 = sadd.s32 %s9, 1
    %s17 = ssub.s32 %s9, %s16
    %p18 = scmp.eq.s32.totalorder %s17, 0
    %s20 = sadd.s32 %s19, 1
    %s21 = scalar_select %p18, %s19, %s20
    %p24 = pneg %p18
    %p25 = scmp.eq.s32.totalorder %s9, 1
    %p26 = por %p24, %p25
    %p27 = scmp.ne.s32.totalorder %s19, %s22
    %p28 = scmp.eq.s32.totalorder %s9, 0
    %p29 = por %p27, %p28
    %p30 = scmp.ne.s32.totalorder %s19, %s22
    %p31 = scmp.eq.s32.totalorder %s14, 1
    %p32 = por %p30, %p31
    %p33 = scmp.ne.s32.totalorder %s22, %s23
    %p34 = scmp.eq.s32.totalorder %s14, 0
    %p35 = por %p33, %p34
    %p36 = scmp.ne.s32.totalorder %s22, %s23
    %p37 = scmp.eq.s32.totalorder %s15, 1
    %p38 = por %p36, %p37
    %p40 = scmp.ne.s32.totalorder %s23, %s39
    %p41 = scmp.eq.s32.totalorder %s15, 0
    %p42 = por %p40, %p41
    %s44 = sadd.s32 %s43, 1
    %p47 = scmp.eq.s32.totalorder %s9, 1
    %p48 = scmp.ne.s32.totalorder %s43, %s45
    %p49 = scmp.eq.s32.totalorder %s9, 0
    %p50 = por %p48, %p49
    %p51 = scmp.ne.s32.totalorder %s43, %s45
    %p52 = scmp.eq.s32.totalorder %s14, 1
    %p53 = por %p51, %p52
    %p54 = scmp.ne.s32.totalorder %s45, %s46
    %p55 = scmp.eq.s32.totalorder %s14, 0
    %p56 = por %p54, %p55
    %p57 = scmp.ne.s32.totalorder %s45, %s46
    %p58 = scmp.eq.s32.totalorder %s15, 1
    %p59 = por %p57, %p58
    %p61 = scmp.ne.s32.totalorder %s46, %s60
    %p62 = scmp.eq.s32.totalorder %s15, 0
    %p63 = por %p61, %p62
    %s65 = sadd.s32 %s64, 1
    %p68 = scmp.eq.s32.totalorder %s9, 1
    %p69 = scmp.ne.s32.totalorder %s64, %s66
    %p70 = scmp.eq.s32.totalorder %s9, 0
    %p71 = por %p69, %p70
    %p72 = scmp.ne.s32.totalorder %s64, %s66
    %p73 = scmp.eq.s32.totalorder %s14, 1
    %p74 = por %p72, %p73
    %p75 = scmp.ne.s32.totalorder %s66, %s67
    %p76 = scmp.eq.s32.totalorder %s14, 0
    %p77 = por %p75, %p76
    %p78 = scmp.ne.s32.totalorder %s66, %s67
    %p79 = scmp.eq.s32.totalorder %s15, 1
    %p80 = por %p78, %p79
    %p82 = scmp.ne.s32.totalorder %s67, %s81
    %p83 = scmp.eq.s32.totalorder %s15, 0
    %p84 = por %p82, %p83
    %s85 = ssub.s32 %s9, %s16
    %p86 = scmp.eq.s32.totalorder %s85, 0
    %s88 = sadd.s32 %s87, 1
    %s89 = scalar_select %p86, %s87, %s88
    %p92 = pneg %p86
    %p93 = scmp.eq.s32.totalorder %s9, 1
    %p94 = por %p92, %p93
    %p95 = scmp.ne.s32.totalorder %s87, %s90
    %p96 = scmp.eq.s32.totalorder %s9, 0
    %p97 = por %p95, %p96
    %p98 = scmp.ne.s32.totalorder %s87, %s90
    %p99 = scmp.eq.s32.totalorder %s14, 1
    %p100 = por %p98, %p99
    %p101 = scmp.ne.s32.totalorder %s90, %s91
    %p102 = scmp.eq.s32.totalorder %s14, 0
    %p103 = por %p101, %p102
    %p104 = scmp.ne.s32.totalorder %s90, %s91
    %p105 = scmp.eq.s32.totalorder %s15, 1
    %p106 = por %p104, %p105
    %p108 = scmp.ne.s32.totalorder %s91, %s107
    %p109 = scmp.eq.s32.totalorder %s15, 0
    %p110 = por %p108, %p109
    %p111 = scmp.le.s32.totalorder 1, %s9
    %p112 = scmp.lt.s32.totalorder %s9, 3
    %p113 = pnand %p111, %p112
    %p114 = pneg %p113
    // Predicated region
    $region9: #{module_fn.1} parent=5 // pred_check
      _
    $region10: #{module_fn.1} parent=5 // pred_check_branch
      %116 = sbr.rel (%p113) target = $region12
    $region11: #{module_fn.1} parent=5 // pred_region
      %s117 = ssub.s32 %s9, 1
      // Predicated region
      $region13: #{module_fn.1} parent=11 // pred_check
        %p118 = pneg %p56
      $region14: #{module_fn.1} parent=11 // pred_check_branch
        %120 = sbr.rel (%p118) target = $region16
      $region15: #{module_fn.1} parent=11 // pred_region
        _
      $region16: #{module_fn.1} parent=11 // pred_fallthru
        _
      // Predicated region
      $region17: #{module_fn.1} parent=11 // pred_check
        %p121 = pneg %p77
      $region18: #{module_fn.1} parent=11 // pred_check_branch
        %123 = sbr.rel (%p121) target = $region20
      $region19: #{module_fn.1} parent=11 // pred_region
        _
      $region20: #{module_fn.1} parent=11 // pred_fallthru
        _
    $region12: #{module_fn.1} parent=5 // pred_fallthru
      _
    %p124 = scmp.lt.s32.totalorder %s9, 2
    // Predicated region
    $region21: #{module_fn.1} parent=5 // pred_check
      %p125 = pneg %p124
    $region22: #{module_fn.1} parent=5 // pred_check_branch
      %127 = sbr.rel (%p125) target = $region24
    $region23: #{module_fn.1} parent=5 // pred_region
      // Predicated region
      $region25: #{module_fn.1} parent=23 // pred_check
        %p128 = pneg %p29
      $region26: #{module_fn.1} parent=23 // pred_check_branch
        %130 = sbr.rel (%p128) target = $region28
      $region27: #{module_fn.1} parent=23 // pred_region
        %p131 = scmp.lt.s32.totalorder %s9, 1
        %s132 = scalar_select %p131, %s9, 1
        %s133 = smul.addr %s132, 3
        %s134 = smul.addr %s133, 2
        %s135 = scalar_lea.vmem %s0, %s134
      $region28: #{module_fn.1} parent=23 // pred_fallthru
        _
    $region24: #{module_fn.1} parent=5 // pred_fallthru
      _
    %p136 = scmp.le.s32.totalorder 1, %s9
    %p137 = scmp.lt.s32.totalorder %s9, 3
    %p138 = pnand %p136, %p137
    %p139 = pneg %p138
    // Predicated region
    $region29: #{module_fn.1} parent=5 // pred_check
      _
    $region30: #{module_fn.1} parent=5 // pred_check_branch
      %141 = sbr.rel (%p138) target = $region32
    $region31: #{module_fn.1} parent=5 // pred_region
      %s142 = ssub.s32 %s9, 1
      %p143 = scmp.lt.s32.totalorder %s14, 1
      %s144 = scalar_select %p143, %s14, 1
      %s145 = smul.addr %s144, 3
      %s146 = smul.addr %s145, 2
      %s147 = scalar_lea.vmem %s0, %s146
      %p148 = pneg %p35
      %p149 = pneg %p32
      %p150 = pneg %p56
      %p151 = pneg %p53
      %p152 = pneg %p77
      %p153 = pneg %p74
      %p154 = pneg %p103
      %p155 = pneg %p100
      %p156 = scmp.lt.s32.totalorder %s14, 1
      %s157 = scalar_select %p156, %s14, 1
      %s158 = smul.addr %s157, 6
      %s159 = smul.addr %s158, 8
      %s160 = scalar_lea.vmem %s3, %s159
      %p161 = scmp.lt.s32.totalorder %s14, 1
      %s162 = scalar_select %p161, %s14, 1
      %s163 = smul.addr %s162, 3
      %s164 = smul.addr %s163, 2
      %s165 = scalar_lea.vmem %s0, %s164
      %p166 = scmp.lt.s32.totalorder %s14, 1
      %s167 = scalar_select %p166, %s14, 1
      %s168 = smul.addr %s167, 6
      %s169 = smul.addr %s168, 8
      %s170 = scalar_lea.vmem %s3, %s169
      %v172 = vld [vmem:[%s1] sm:$0xf]
      %v173 = vld [vmem:[%s1 + $0x4] sm:$0xf]
      %v174 = vld [vmem:[%s2] sm:$0xff]
      %v175 = vld [vmem:[%s2 + $0x8] sm:$0xff]
      %v176 = vld [vmem:[%s165] sm:$0x3f]
      %v178 = vcombine.high %v176, %v176
      %v180 = vunpack.c.l.s4 1983009808
      %v181 = vunpack.c.0.s8 %v180
      %v182 = vlaneseq
      %v183 = vshrl.u32 %v182, 7
      %v184 = vsub.s32 %v181, %v183
      %v185 = vrot.slane %v176, %v184
      %v187 = vunpack.c.l.s4 1983009808
      %v188 = vunpack.c.0.s8 %v187
      %v189 = vlaneseq
      %v190 = vshrl.u32 %v189, 7
      %v191 = vsub.s32 %v188, %v190
      %v192 = vrot.slane %v178, %v191
      %v193 = vcombine.high %v185, %v185
      %v194 = vcombine.low %v176, %v176
      %v196 = vunpack.c.l.s4 1983009808
      %v197 = vunpack.c.0.s8 %v196
      %v198 = vlaneseq
      %v199 = vshrl.u32 %v198, 7
      %v200 = vsub.s32 %v197, %v199
      %v201 = vrot.slane %v194, %v200
      %v202 = vcombine.high %v201, %v201
      %203 = vrot.lane.b32.xlu0 %v201, 127
      %v204 = vpop.permute.xlu0 %203
      %205 = vrot.lane.b32.xlu0 %v202, 127
      %v206 = vpop.permute.xlu0 %205
      %207 = vrot.lane.b32.xlu0 %v185, 127
      %v208 = vpop.permute.xlu0 %207
      %vm209 = vcmask 1039360
      %v210 = vsel %vm209, %v204, %v206
      %v211 = vsel %vm209, %v206, %v208
      %v212 = vcombine.low %v185, %v185
      %v213 = vcombine.low %v192, %v192
      %214 = vrot.lane.b32.xlu0 %v212, 126
      %v215 = vpop.permute.xlu0 %214
      %216 = vrot.lane.b32.xlu0 %v185, 126
      %v217 = vpop.permute.xlu0 %216
      %218 = vrot.lane.b32.xlu0 %v213, 126
      %v219 = vpop.permute.xlu0 %218
      %vm220 = vcmask 1031168
      %v221 = vsel %vm220, %v215, %v217
      %v222 = vsel %vm220, %v217, %v219
      %v223 = vcombine.low %v201, %v201
      %224 = vrot.lane.b32.xlu0 %v223, 110
      %v225 = vpop.permute.xlu0 %224
      %226 = vrot.lane.b32.xlu0 %v201, 110
      %v227 = vpop.permute.xlu0 %226
      %228 = vrot.lane.b32.xlu0 %v212, 110
      %v229 = vpop.permute.xlu0 %228
      %vm230 = vcmask 900096
      %v231 = vsel %vm230, %v225, %v227
      %v232 = vsel %vm230, %v227, %v229
      %233 = vrot.lane.b32.xlu0 %v185, 109
      %v234 = vpop.permute.xlu0 %233
      %235 = vrot.lane.b32.xlu0 %v193, 109
      %v236 = vpop.permute.xlu0 %235
      %237 = vrot.lane.b32.xlu0 %v192, 109
      %v238 = vpop.permute.xlu0 %237
      %vm239 = vcmask 891904
      %v240 = vsel %vm239, %v234, %v236
      %v241 = vsel %vm239, %v236, %v238
      %242 = vrot.lane.b32.xlu0 %v201, 108
      %v243 = vpop.permute.xlu0 %242
      %244 = vrot.lane.b32.xlu0 %v202, 108
      %v245 = vpop.permute.xlu0 %244
      %246 = vrot.lane.b32.xlu0 %v185, 108
      %v247 = vpop.permute.xlu0 %246
      %vm248 = vcmask 883712
      %v249 = vsel %vm248, %v243, %v245
      %v250 = vsel %vm248, %v245, %v247
      %251 = vrot.lane.b32.xlu0 %v212, 92
      %v252 = vpop.permute.xlu0 %251
      %253 = vrot.lane.b32.xlu0 %v185, 92
      %v254 = vpop.permute.xlu0 %253
      %255 = vrot.lane.b32.xlu0 %v213, 92
      %v256 = vpop.permute.xlu0 %255
      %vm257 = vcmask 752640
      %v258 = vsel %vm257, %v252, %v254
      %v259 = vsel %vm257, %v254, %v256
      %260 = vrot.lane.b32.xlu0 %v223, 91
      %v261 = vpop.permute.xlu0 %260
      %262 = vrot.lane.b32.xlu0 %v201, 91
      %v263 = vpop.permute.xlu0 %262
      %264 = vrot.lane.b32.xlu0 %v212, 91
      %v265 = vpop.permute.xlu0 %264
      %vm266 = vcmask 744448
      %v267 = vsel %vm266, %v261, %v263
      %v268 = vsel %vm266, %v263, %v265
      %269 = vrot.lane.b32.xlu0 %v185, 90
      %v270 = vpop.permute.xlu0 %269
      %271 = vrot.lane.b32.xlu0 %v193, 90
      %v272 = vpop.permute.xlu0 %271
      %273 = vrot.lane.b32.xlu0 %v192, 90
      %v274 = vpop.permute.xlu0 %273
      %vm275 = vcmask 736256
      %v276 = vsel %vm275, %v270, %v272
      %v277 = vsel %vm275, %v272, %v274
      %vm278 = vcmask 1041408
      %v281 = vsel %vm278, %v185, %v210
      %v284 = vsel %vm278, %v193, %v211
      %v287 = vsel %vm278, %v192, %v208
      %vm288 = vcmask 1043456
      %v290 = vsel %vm288, %v281, %v221
      %v292 = vsel %vm288, %v284, %v222
      %v294 = vsel %vm288, %v287, %v219
      %vm295 = vcmask 1045504
      %v297 = vsel %vm295, %v290, %v231
      %v300 = vsel %vm295, %v292, %v232
      %v303 = vsel %vm295, %v294, %v229
      %v307 = vsel %vm278, %v240, %v249
      %v310 = vsel %vm278, %v241, %v250
      %v313 = vsel %vm278, %v238, %v247
      %v315 = vsel %vm288, %v307, %v258
      %v317 = vsel %vm288, %v310, %v259
      %v319 = vsel %vm288, %v313, %v256
      %v321 = vsel %vm295, %v315, %v267
      %v324 = vsel %vm295, %v317, %v268
      %v327 = vsel %vm295, %v319, %v265
      %330 = vset.pattern.permute.xlu0 0
      %331 = vperm.xlu0 %330, %v174
      %v332 = vpop.permute.xlu0 %331
      %335 = vset.pattern.permute.xlu0 0
      %336 = vperm.xlu0 %335, %v175
      %v337 = vpop.permute.xlu0 %336
      %v341 = vunpack.c.l.b16 %v172
      %v342 = vunpack.c.l.b16 %v173
      %v343 = vpack.c.b16 %v342, %v341
      %vm344 = vcmask 293888
      %v346 = vsel %vm344, %v343, 0
      %v349 = vsel %vm278, %v276, 0
      %v352 = vsel %vm278, %v277, 0
      %v355 = vsel %vm278, %v274, 0
      %357 = vmatprep.subr.bf16.mxu0 %v300
      %358 = vmatpush1.bf16.msra.mxu0 %v297
      %359 = vmatprep.subr.bf16.mxu0 %v324
      %360 = vmatpush1.bf16.msra.mxu0 %v321
      %361 = vmatprep.subr.bf16.mxu0 %v352
      %362 = vmatpush1.bf16.msra.mxu0 %v349
      %363 = vmatprep.subr.bf16.mxu0 0
      %364 = vmatpush1.bf16.msra.mxu0 0
      %365 = vmatprep.subr.bf16.mxu0 0
      %366 = vmatpush1.bf16.msra.mxu0 0
      %367 = vmatprep.subr.bf16.mxu0 0
      %368 = vmatpush1.bf16.msra.mxu0 0
      %369 = vmatprep.subr.bf16.mxu0 0
      %370 = vmatpush1.bf16.msra.mxu0 0
      %371 = vmatprep.subr.bf16.mxu0 0
      %372 = vmatpush1.bf16.msra.mxu0 0
      %373 = vmatprep.subr.bf16.mxu0 0
      %374 = vmatpush1.bf16.msra.mxu0 0
      %375 = vmatprep.subr.bf16.mxu0 0
      %376 = vmatpush1.bf16.msra.mxu0 0
      %377 = vmatprep.subr.bf16.mxu0 0
      %378 = vmatpush1.bf16.msra.mxu0 0
      %379 = vmatprep.subr.bf16.mxu0 0
      %380 = vmatpush1.bf16.msra.mxu0 0
      %381 = vmatprep.subr.bf16.mxu0 0
      %382 = vmatpush1.bf16.msra.mxu0 0
      %383 = vmatprep.subr.bf16.mxu0 0
      %384 = vmatpush1.bf16.msra.mxu0 0
      %385 = vmatprep.subr.bf16.mxu0 0
      %386 = vmatpush1.bf16.msra.mxu0 0
      %387 = vmatprep.subr.bf16.mxu0 0
      %388 = vmatpush1.bf16.msra.mxu0 0
      %389 = vmatprep.mubr.bf16.mxu0 0
      %390 = vmatmul.mubr.bf16.gmra.mrb[0].mxu0 %v346
      %v391 = vpop.f32.mrb[0].mxu0
      %v392 = vadd.f32 %v332, %v391
      %v393 = vpop.f32.mrb[0].mxu0
      %v394 = vadd.f32 %v332, %v393
      %v395 = vpop.f32.mrb[0].mxu0
      %v396 = vadd.f32 %v337, %v395
      %v397 = vpop.f32.mrb[0].mxu0
      %v398 = vadd.f32 %v337, %v397
      %399 = vdwg.mxu0
      %400 = vmatprep.subr.bf16.mxu0 0
      %401 = vmatpush1.bf16.msra.mxu0 %v303
      %402 = vmatprep.subr.bf16.mxu0 0
      %403 = vmatpush1.bf16.msra.mxu0 %v327
      %404 = vmatprep.subr.bf16.mxu0 0
      %405 = vmatpush1.bf16.msra.mxu0 %v355
      %406 = vmatprep.subr.bf16.mxu0 0
      %407 = vmatpush1.bf16.msra.mxu0 0
      %408 = vmatprep.subr.bf16.mxu0 0
      %409 = vmatpush1.bf16.msra.mxu0 0
      %410 = vmatprep.subr.bf16.mxu0 0
      %411 = vmatpush1.bf16.msra.mxu0 0
      %412 = vmatprep.subr.bf16.mxu0 0
      %413 = vmatpush1.bf16.msra.mxu0 0
      %414 = vmatprep.subr.bf16.mxu0 0
      %415 = vmatpush1.bf16.msra.mxu0 0
      %416 = vmatprep.subr.bf16.mxu0 0
      %417 = vmatpush1.bf16.msra.mxu0 0
      %418 = vmatprep.subr.bf16.mxu0 0
      %419 = vmatpush1.bf16.msra.mxu0 0
      %420 = vmatprep.subr.bf16.mxu0 0
      %421 = vmatpush1.bf16.msra.mxu0 0
      %422 = vmatprep.subr.bf16.mxu0 0
      %423 = vmatpush1.bf16.msra.mxu0 0
      %424 = vmatprep.subr.bf16.mxu0 0
      %425 = vmatpush1.bf16.msra.mxu0 0
      %426 = vmatprep.subr.bf16.mxu0 0
      %427 = vmatpush1.bf16.msra.mxu0 0
      %428 = vmatprep.subr.bf16.mxu0 0
      %429 = vmatpush1.bf16.msra.mxu0 0
      %430 = vmatprep.subr.bf16.mxu0 0
      %431 = vmatpush1.bf16.msra.mxu0 0
      %432 = vmatprep.mubr.bf16.mxu0 0
      %433 = vmatmul.mubr.bf16.gmra.mrb[0].mxu0 %v346
      %v434 = vpop.f32.mrb[0].mxu0
      %v435 = vadd.f32 %v332, %v434
      %v436 = vpop.f32.mrb[0].mxu0
      %v437 = vpop.f32.mrb[0].mxu0
      %v438 = vadd.f32 %v337, %v437
      %v439 = vpop.f32.mrb[0].mxu0
      %440 = vdwg.mxu0
      %v441 = vmax.f32 %v392, 0.0
      %v442 = vmax.f32 %v394, 0.0
      %v443 = vmax.f32 %v435, 0.0
      %v444 = vmax.f32 %v396, 0.0
      %v445 = vmax.f32 %v398, 0.0
      %v446 = vmax.f32 %v438, 0.0
      %447 = vst [vmem:[%s170] sm:$0xff] %v441
      %448 = vst [vmem:[%s170 + $0x8] sm:$0xff] %v442
      %vm449 = vcmask 261120
      %450 = vst.msk [vmem:[%s170 + $0x10] sm:$0xff] %vm449, %v443
      %451 = vst [vmem:[%s170 + $0x18] sm:$0xff] %v444
      %452 = vst [vmem:[%s170 + $0x20] sm:$0xff] %v445
      %453 = vst.msk [vmem:[%s170 + $0x28] sm:$0xff] %vm449, %v446
      %p454 = scmp.lt.s32.totalorder %s14, 1
      %s455 = scalar_select %p454, %s14, 1
      %s456 = smul.addr %s455, 6
      %s457 = smul.addr %s456, 8
      %s458 = scalar_lea.vmem %s3, %s457
      // Predicated region
      $region33: #{module_fn.1} parent=31 // pred_check
        %p459 = pneg %p100
      $region34: #{module_fn.1} parent=31 // pred_check_branch
        %461 = sbr.rel (%p459) target = $region36
      $region35: #{module_fn.1} parent=31 // pred_region
        _
      $region36: #{module_fn.1} parent=31 // pred_fallthru
        _
    $region32: #{module_fn.1} parent=5 // pred_fallthru
      _
    %p462 = scmp.le.s32.totalorder 2, %s9
    // Predicated region
    $region37: #{module_fn.1} parent=5 // pred_check
      %p463 = pneg %p462
    $region38: #{module_fn.1} parent=5 // pred_check_branch
      %465 = sbr.rel (%p463) target = $region40
    $region39: #{module_fn.1} parent=5 // pred_region
      %s466 = ssub.s32 %s9, 2
      // Predicated region
      $region41: #{module_fn.1} parent=39 // pred_check
        %p467 = pneg %p106
      $region42: #{module_fn.1} parent=39 // pred_check_branch
        %469 = sbr.rel (%p467) target = $region44
      $region43: #{module_fn.1} parent=39 // pred_region
        %p470 = scmp.lt.s32.totalorder %s15, 1
        %s471 = scalar_select %p470, %s15, 1
        %s472 = smul.addr %s471, 6
        %s473 = smul.addr %s472, 8
        %s474 = scalar_lea.vmem %s3, %s473
      $region44: #{module_fn.1} parent=39 // pred_fallthru
        _
    $region40: #{module_fn.1} parent=5 // pred_fallthru
      _
  $region6: #{module_fn.1} parent=0 // loop_footer
    %s13 = sadd.s32 1, %s9
  $region7: #{module_fn.1} parent=0 // loop_footer_branch
    %8 = sbr.rel target = $region3
  $region8: #{module_fn.1} parent=0 // loop_exit
    _

</llo_original>
